<compile_context>
chip_gen: v6e
topology: v6e:2x2x1
jax: 0.10.0
libtpu: 0.0.40
codegen_flags: <defaults>
</compile_context>

<pallas_src>
import functools

import jax
import jax.numpy as jnp
from jax.experimental import pallas as pl
from jax.experimental.pallas import tpu as pltpu


def _round_up(x, m):
    return ((x + m - 1) // m) * m


def _label_smoothing_kernel(pred_ref, tgt_ref, out_ref, *,
                            smooth_val, confidence, n_valid, tile_b):
    """One batch tile.  pred_ref: (C, TB); tgt_ref: (1, TB) int32; out_ref: (1, TB)."""
    i = pl.program_id(0)

    pred = pred_ref[...].astype(jnp.float32)                   # (C, TB)
    C = pred.shape[0]

    # Numerically stable log_softmax along the class (sublane) axis, per column.
    m = jnp.max(pred, axis=0, keepdims=True)                   # (1, TB)
    shifted = pred - m                                          # (C, TB)
    lse = jnp.log(jnp.sum(jnp.exp(shifted), axis=0, keepdims=True))   # (1, TB)

    # sum_c logp = sum_c shifted - C * lse   (no full (C, TB) logp tensor needed)
    sum_logp = jnp.sum(shifted, axis=0, keepdims=True) - jnp.float32(C) * lse

    # logp at the target class via a masked sublane sum (no true_dist tensor).
    cls_ids = jax.lax.broadcasted_iota(jnp.int32, pred.shape, 0)        # (C, TB)
    onehot = cls_ids == tgt_ref[...]                                     # (C, TB)
    tgt_logp = jnp.sum(jnp.where(onehot, shifted, 0.0),
                       axis=0, keepdims=True) - lse                      # (1, TB)

    # sum_c(-true_dist * logp) = -(smooth*sum_c logp + (conf - smooth)*logp[tgt])
    loss_cols = -(jnp.float32(smooth_val) * sum_logp
                  + jnp.float32(confidence - smooth_val) * tgt_logp)     # (1, TB)

    # Zero out batch-padding columns (last tile is padded to a lane multiple),
    # so the wrapper's plain sum is already the sum over the true batch.
    col = i * tile_b + jax.lax.broadcasted_iota(jnp.int32, loss_cols.shape, 1)
    out_ref[...] = jnp.where(col < n_valid, loss_cols, 0.0)


def label_smoothing_loss(pred, target, *, classes=18, smoothing=0.0,
                         max_tile_b=32768):
    """pred: (B, classes), any float dtype; target: (B,) int.  Returns f32 scalar."""
    assert pred.ndim == 2 and pred.shape[1] == classes
    B, C = pred.shape
    confidence = 1.0 - smoothing
    smooth_val = smoothing / (C - 1) if C > 1 else 0.0

    # Batch tiling: lane-multiple tiles, balanced across blocks; double-buffered
    # tiles stay a few MiB so they fit v5e's / v7x's smaller scoped VMEM too.
    b128 = _round_up(B, 128)
    num_blocks = -(-b128 // max_tile_b)
    tile_b = _round_up(-(-b128 // num_blocks), 128)
    b_pad = num_blocks * tile_b

    # Lane-dense layout: classes on sublanes, batch on the 128-lane axis.
    # TODO(synk): if the producer can emit class-major (C, B) logits directly,
    # drop this transpose/pad copy and pass them straight through.
    pred_t = jnp.pad(pred, ((0, b_pad - B), (0, 0))).T                   # (C, b_pad)
    tgt_row = jnp.pad(target.astype(jnp.int32), (0, b_pad - B)).reshape(1, b_pad)

    kernel = functools.partial(
        _label_smoothing_kernel,
        smooth_val=smooth_val, confidence=confidence,
        n_valid=B, tile_b=tile_b)

    losses = pl.pallas_call(
        kernel,
        out_shape=jax.ShapeDtypeStruct((1, b_pad), jnp.float32),
        grid=(num_blocks,),
        in_specs=[
            pl.BlockSpec((C, tile_b), lambda i: (0, i)),   # logits tile (class-major)
            pl.BlockSpec((1, tile_b), lambda i: (0, i)),   # target indices (lane-dense)
        ],
        out_specs=pl.BlockSpec((1, tile_b), lambda i: (0, i)),  # per-sample losses
        compiler_params=pltpu.CompilerParams(
            dimension_semantics=("parallel",)),
        cost_estimate=pl.CostEstimate(
            flops=8 * B * C,
            transcendentals=B * C + B,
            bytes_accessed=pred.size * pred.dtype.itemsize
                           + 4 * b_pad + 4 * b_pad),
    )(pred_t, tgt_row)

    # Tiny final reduction + mean over the true batch size (done once, here).
    return jnp.sum(losses) / jnp.float32(B)


def _reference(pred, target, *, classes=18, smoothing=0.0):
    confidence = 1.0 - smoothing
    logp = jax.nn.log_softmax(pred.astype(jnp.float32), axis=-1)
    true_dist = jnp.full_like(logp, smoothing / (classes - 1))
    true_dist = true_dist.at[jnp.arange(pred.shape[0]), target].set(confidence)
    return jnp.mean(jnp.sum(-true_dist * logp, axis=-1))


if __name__ == "__main__":
    C = 18
    smoothing = 0.1
    key = jax.random.PRNGKey(0)
    kp, kt = jax.random.split(key)

    # Small demo shape matching the module (single tile, heavy lane masking).
    B = 8
    pred = jax.random.normal(kp, (B, C), dtype=jnp.float32)
    target = jax.random.randint(kt, (B,), 0, C, dtype=jnp.int32)
    loss = jax.block_until_ready(
        label_smoothing_loss(pred, target, classes=C, smoothing=smoothing))
    ref = _reference(pred, target, classes=C, smoothing=smoothing)
    assert jnp.allclose(loss, ref, atol=1e-5, rtol=1e-5), (loss, ref)

    # Non-multiple-of-tile batch in bf16 (exercises padding mask + dtype path).
    B2 = 2500
    pred2 = jax.random.normal(kp, (B2, C), dtype=jnp.bfloat16)
    target2 = jax.random.randint(kt, (B2,), 0, C, dtype=jnp.int32)
    loss2 = jax.block_until_ready(
        label_smoothing_loss(pred2, target2, classes=C, smoothing=smoothing))
    ref2 = _reference(pred2.astype(jnp.float32), target2,
                      classes=C, smoothing=smoothing)
    assert jnp.allclose(loss2, ref2, atol=1e-3, rtol=1e-3), (loss2, ref2)

    # Zero-smoothing path (pure NLL) also matches.
    loss3 = jax.block_until_ready(
        label_smoothing_loss(pred, target, classes=C, smoothing=0.0))
    ref3 = _reference(pred, target, classes=C, smoothing=0.0)
    assert jnp.allclose(loss3, ref3, atol=1e-5, rtol=1e-5), (loss3, ref3)

    print("KERNEL_OK")
</pallas_src>

<mosaic_0001>
module attributes {stable_mosaic.version = 11 : i64} {
  func.func @_label_smoothing_kernel(%arg0: i32, %arg1: memref<18x128xf32, #tpu.memory_space<vmem>>, %arg2: memref<1x128xi32, #tpu.memory_space<vmem>>, %arg3: memref<1x128xf32, #tpu.memory_space<vmem>>) attributes {dimension_semantics = [#tpu.dimension_semantics<parallel>], iteration_bounds = array<i64: 1>, scalar_prefetch = 0 : i64, scratch_operands = 0 : i64, tpu.core_type = #tpu.core_type<tc>, window_params = [{transform_indices = @transform_0, window_bounds = array<i64: 18, 128>}, {transform_indices = @transform_1, window_bounds = array<i64: 1, 128>}, {transform_indices = @transform_2, window_bounds = array<i64: 1, 128>}]} {
    %c0 = arith.constant 0 : index
    %c0_0 = arith.constant 0 : index
    %0 = vector.load %arg1[%c0, %c0_0] : memref<18x128xf32, #tpu.memory_space<vmem>>, vector<18x128xf32>
    %cst = arith.constant dense<0xFF800000> : vector<128xf32>
    %1 = vector.multi_reduction <maximumf>, %0, %cst [0] : vector<18x128xf32> to vector<128xf32>
    %2 = vector.shape_cast %1 : vector<128xf32> to vector<1x128xf32>
    %3 = vector.broadcast %2 : vector<1x128xf32> to vector<18x128xf32>
    %4 = arith.subf %0, %3 : vector<18x128xf32>
    %5 = math.exp %4 : vector<18x128xf32>
    %cst_1 = arith.constant dense<0.000000e+00> : vector<128xf32>
    %6 = vector.multi_reduction <add>, %5, %cst_1 [0] : vector<18x128xf32> to vector<128xf32>
    %7 = vector.shape_cast %6 : vector<128xf32> to vector<1x128xf32>
    %8 = math.log %7 : vector<1x128xf32>
    %cst_2 = arith.constant dense<0.000000e+00> : vector<128xf32>
    %9 = vector.multi_reduction <add>, %4, %cst_2 [0] : vector<18x128xf32> to vector<128xf32>
    %10 = vector.shape_cast %9 : vector<128xf32> to vector<1x128xf32>
    %cst_3 = arith.constant 1.800000e+01 : f32
    %11 = vector.broadcast %cst_3 : f32 to vector<1x128xf32>
    %12 = arith.mulf %11, %8 : vector<1x128xf32>
    %13 = arith.subf %10, %12 : vector<1x128xf32>
    %14 = tpu.iota {dimensions = array<i32: 0>} : vector<18x128xi32>
    %c0_4 = arith.constant 0 : index
    %c0_5 = arith.constant 0 : index
    %15 = vector.load %arg2[%c0_4, %c0_5] : memref<1x128xi32, #tpu.memory_space<vmem>>, vector<1x128xi32>
    %16 = vector.broadcast %15 : vector<1x128xi32> to vector<18x128xi32>
    %17 = arith.cmpi eq, %14, %16 : vector<18x128xi32>
    %cst_6 = arith.constant 0.000000e+00 : f32
    %18 = vector.broadcast %cst_6 : f32 to vector<18x128xf32>
    %19 = arith.select %17, %4, %18 : vector<18x128xi1>, vector<18x128xf32>
    %cst_7 = arith.constant dense<0.000000e+00> : vector<128xf32>
    %20 = vector.multi_reduction <add>, %19, %cst_7 [0] : vector<18x128xf32> to vector<128xf32>
    %21 = vector.shape_cast %20 : vector<128xf32> to vector<1x128xf32>
    %22 = arith.subf %21, %8 : vector<1x128xf32>
    %cst_8 = arith.constant 0.00588235306 : f32
    %23 = vector.broadcast %cst_8 : f32 to vector<1x128xf32>
    %24 = arith.mulf %23, %13 : vector<1x128xf32>
    %cst_9 = arith.constant 0.894117653 : f32
    %25 = vector.broadcast %cst_9 : f32 to vector<1x128xf32>
    %26 = arith.mulf %25, %22 : vector<1x128xf32>
    %27 = arith.addf %24, %26 : vector<1x128xf32>
    %cst_10 = arith.constant 0.000000e+00 : f32
    %28 = vector.broadcast %cst_10 : f32 to vector<1x128xf32>
    %29 = arith.subf %28, %27 : vector<1x128xf32>
    %c128_i32 = arith.constant 128 : i32
    %30 = arith.muli %arg0, %c128_i32 : i32
    %31 = tpu.iota {dimensions = array<i32: 1>} : vector<1x128xi32>
    %32 = vector.broadcast %30 : i32 to vector<1x128xi32>
    %33 = arith.addi %32, %31 : vector<1x128xi32>
    %c8_i32 = arith.constant 8 : i32
    %34 = vector.broadcast %c8_i32 : i32 to vector<1x128xi32>
    %35 = arith.cmpi slt, %33, %34 : vector<1x128xi32>
    %cst_11 = arith.constant 0.000000e+00 : f32
    %36 = vector.broadcast %cst_11 : f32 to vector<1x128xf32>
    %37 = arith.select %35, %29, %36 : vector<1x128xi1>, vector<1x128xf32>
    %c0_12 = arith.constant 0 : index
    %c0_13 = arith.constant 0 : index
    %38 = vector.load %arg3[%c0_12, %c0_13] : memref<1x128xf32, #tpu.memory_space<vmem>>, vector<1x128xf32>
    tpu.vector_store %arg3[%c0_12, %c0_13], %37 {strides = array<i32>} : memref<1x128xf32, #tpu.memory_space<vmem>>, vector<1x128xf32>,
    return
  }
  func.func @transform_0(%arg0: i32) -> (i32, i32) {
    %c0_i32 = arith.constant 0 : i32
    %c0_i32_0 = arith.constant 0 : i32
    return %c0_i32, %arg0 : i32, i32
  }
  func.func @transform_1(%arg0: i32) -> (i32, i32) {
    %c0_i32 = arith.constant 0 : i32
    %c0_i32_0 = arith.constant 0 : i32
    return %c0_i32, %arg0 : i32, i32
  }
  func.func @transform_2(%arg0: i32) -> (i32, i32) {
    %c0_i32 = arith.constant 0 : i32
    %c0_i32_0 = arith.constant 0 : i32
    return %c0_i32, %arg0 : i32, i32
  }
}

</mosaic_0001>

<llo_original>
// kernel: tpu_custom_call.1
$region0: #{tpu_custom_call.1}
  #allocation0 [shape = 'u32[]', space=smem, size = 0x4, offset = 0x4, fixed_abs, tag = 'smem constant byte address 0x4 - core index']
  #allocation1 [shape = 'u32[144,128]{1,0:T(1,128)}', space=vmem, size = 0x12000, scoped, tag = 'internal scratch']
  %s0 = inlined_call_operand.hbm [shape: f32[18,128], index: 0, kind: input, shape index: {}]
  %s1 = inlined_call_operand.vmem [shape: s32[1,128], index: 1, kind: input, shape index: {}]
  %s2 = inlined_call_operand.hbm [shape: f32[1,128], index: 2, kind: output, shape index: {}]
  %s3 = sld [smem:[#allocation0]]
  $region22: #{tpu_custom_call.1} parent=0
    _
  %s5 = ssub.s32 1, %s3
  %s6 = scalar_select 0, %s5, %s3
  $region1: #{tpu_custom_call.1} parent=0
    #allocation2 [shape = 'u8[12288]{0}', space=vmem, size = 0x3000, scoped, tag = 'input window, operand 0, single buffered']
    #allocation3 [shape = 's32[1]{0}', space=sflag, size = 0x4, scoped, tag = 'scoped memory for tpu_custom_call.1']
    #allocation4 [shape = 's32[1]{0}', space=sflag, size = 0x4, scoped, tag = 'scoped memory for tpu_custom_call.1']
    #allocation5 [shape = 'u8[512]{0}', space=vmem, size = 0x400, scoped, tag = 'output window, operand 0, single buffered']
    %7 = vsyncpa [#allocation3], 0
    %8 = vsyncpa [#allocation4], 0
    // Predicated region
    $region2: #{tpu_custom_call.1} parent=1 // pred_check
      _
    $region3: #{tpu_custom_call.1} parent=1 // pred_check_branch
      %10 = sbr.rel (0) target = $region5
    $region4: #{tpu_custom_call.1} parent=1 // pred_region
      %s12 = ssub.s32 384, 384
      %13 = vsyncadd [#allocation3], %s12
      %s14 = sshll.u32 [#allocation2], 4
      %s15 = int_to_ptr.vmem [resolvable:$true] %s14
      %20 = dma.hbm_to_vmem [thread:$0]  %s0, 384, %s15, [#allocation3], 128, 128, 8
    $region5: #{tpu_custom_call.1} parent=1 // pred_fallthru
      _
    // Predicated region
    $region6: #{tpu_custom_call.1} parent=1 // pred_check
      _
    $region7: #{tpu_custom_call.1} parent=1 // pred_check_branch
      %22 = sbr.rel (0) target = $region9
    $region8: #{tpu_custom_call.1} parent=1 // pred_region
      _
    $region9: #{tpu_custom_call.1} parent=1 // pred_fallthru
      _
    // Predicated region
    $region10: #{tpu_custom_call.1} parent=1 // pred_check
      _
    $region11: #{tpu_custom_call.1} parent=1 // pred_check_branch
      %24 = sbr.rel (0) target = $region13
    $region12: #{tpu_custom_call.1} parent=1 // pred_region
      %25 = dma.done [#allocation3], 384
    $region13: #{tpu_custom_call.1} parent=1 // pred_fallthru
      _
    %v26 = vld [vmem:[#allocation2] sm:$0xff]
    %v27 = vld [vmem:[#allocation2 + $0x8] sm:$0xff]
    %v28 = vld [vmem:[#allocation2 + $0x10] sm:$0x3]
    %vm29 = vcmask 1041408
    %v30 = vsel %vm29, %v28, -inf
    %v31 = vmax.f32 %v26, %v27
    %v32 = vmax.f32 %v31, %v30
    %v33 = vrot.slane %v32, 4
    %v34 = vmax.f32 %v32, %v33
    %v35 = vrot.slane %v34, 2
    %v36 = vmax.f32 %v34, %v35
    %v37 = vrot.slane %v36, 1
    %v38 = vmax.f32 %v36, %v37
    %v39 = vsub.f32 %v26, %v38
    %v40 = vsub.f32 %v27, %v38
    %v41 = vsub.f32 %v28, %v38
    %v42 = vmul.f32 %v39, 1.442695
    %v43 = vpow.pop %v42
    %v44 = vmul.f32 %v40, 1.442695
    %v45 = vpow.pop %v44
    %v46 = vmul.f32 %v41, 1.442695
    %v47 = vpow.pop %v46
    %v48 = vadd.f32 %v43, %v45
    %v49 = vsel %vm29, %v47, 0.0
    %v50 = vadd.f32 %v48, %v49
    %v51 = vrot.slane %v50, 4
    %v52 = vadd.f32 %v50, %v51
    %v53 = vrot.slane %v52, 2
    %v54 = vadd.f32 %v52, %v53
    %v55 = vrot.slane %v54, 1
    %v56 = vadd.f32 %v54, %v55
    %v57 = vlog2.pop %v56
    %v58 = vmul.f32 %v57, 0.6931472
    %v59 = vadd.f32 %v39, %v40
    %v60 = vsel %vm29, %v41, 0.0
    %v61 = vadd.f32 %v59, %v60
    %v62 = vrot.slane %v61, 4
    %v63 = vadd.f32 %v61, %v62
    %v64 = vrot.slane %v63, 2
    %v65 = vadd.f32 %v63, %v64
    %v66 = vrot.slane %v65, 1
    %v67 = vadd.f32 %v65, %v66
    %v68 = vmul.f32 %v58, 18.0
    %v69 = vsub.f32 %v67, %v68
    %v70 = vlaneseq
    %v71 = vshrl.u32 %v70, 7
    %v72 = vadd.s32 %v71, 8
    %v73 = vadd.s32 %v71, 16
    %v74 = vld [vmem:[%s1] sm:$0x1]
    %v75 = vlaneseq
    %v76 = vshrl.u32 %v75, 7
    %v77 = vsub.s32 0, %v76
    %v78 = vrot.slane %v74, %v77
    %vm79 = vcmp.eq.s32.totalorder %v71, %v78
    %vm80 = vcmp.eq.s32.totalorder %v72, %v78
    %vm81 = vcmp.eq.s32.totalorder %v73, %v78
    %v82 = vsel %vm79, %v39, 0.0
    %v83 = vsel %vm80, %v40, 0.0
    %v84 = vsel %vm81, %v41, 0.0
    %v85 = vadd.f32 %v82, %v83
    %v86 = vsel %vm29, %v84, 0.0
    %v87 = vadd.f32 %v85, %v86
    %v88 = vrot.slane %v87, 4
    %v89 = vadd.f32 %v87, %v88
    %v90 = vrot.slane %v89, 2
    %v91 = vadd.f32 %v89, %v90
    %v92 = vrot.slane %v91, 1
    %v93 = vadd.f32 %v91, %v92
    %v94 = vsub.f32 %v93, %v58
    %v95 = vmul.f32 %v69, 0.005882353
    %v96 = vmul.f32 %v94, 0.89411765
    %v97 = vadd.f32 %v95, %v96
    %v98 = vsub.f32 0.0, %v97
    %s99 = smul.u32 0, 128
    %v100 = vlaneseq
    %v101 = vand.u32 %v100, 127
    %v102 = vstv %s99
    %v103 = vadd.s32 %v102, %v101
    %vm104 = vcmp.lt.s32.totalorder %v103, 8
    %v105 = vsel %vm104, %v98, 0.0
    %106 = vst [vmem:[#allocation5] sm:$0x1] %v105
    // Predicated region
    $region14: #{tpu_custom_call.1} parent=1 // pred_check
      _
    $region15: #{tpu_custom_call.1} parent=1 // pred_check_branch
      %108 = sbr.rel (0) target = $region17
    $region16: #{tpu_custom_call.1} parent=1 // pred_region
      %s110 = ssub.s32 16, 16
      %111 = vsyncadd [#allocation4], %s110
      %s113 = sshll.u32 [#allocation5], 4
      %s114 = int_to_ptr.vmem [resolvable:$true] %s113
      %116 = dma.vmem_to_hbm [thread:$0]  %s114, 16, %s2, [#allocation4]
    $region17: #{tpu_custom_call.1} parent=1 // pred_fallthru
      _
    // Predicated region
    $region18: #{tpu_custom_call.1} parent=1 // pred_check
      _
    $region19: #{tpu_custom_call.1} parent=1 // pred_check_branch
      %118 = sbr.rel (0) target = $region21
    $region20: #{tpu_custom_call.1} parent=1 // pred_region
      %119 = dma.done [#allocation4], 16
    $region21: #{tpu_custom_call.1} parent=1 // pred_fallthru
      _
    %120 = vsyncpa [#allocation3], 1
    %121 = vsyncpa [#allocation4], 1

</llo_original>
